<compile_context>
chip_gen: v7x
topology: tpu7x:2x2x1
jax: 0.10.0
libtpu: 0.0.40
codegen_flags: <defaults>
</compile_context>

<pallas_src>
import functools

import jax
import jax.numpy as jnp
from jax import lax
from jax.experimental import pallas as pl
from jax.experimental.pallas import tpu as pltpu


# ----------------------------- configuration ------------------------------
class Cfg:
    batch = 2
    channels = 4
    height = 16
    width = 16
    seq = 8
    vocab = 64
    tok_dim = 32
    image_embedding = 32
    text_embedding = 32
    projection_dim = 16
    num_clusters = 8
    temperature = 1.0
    cluster_weight = 0.5
    consistency_weight = 1.0
    dropout = 0.1  # inference mode -> identity


def _round8(x):
    return (x + 7) // 8 * 8


def _slab_layout(cfg):
    """Row offsets of each weight block inside the packed 2-D weight slab."""
    r_img = 0
    r_tok = _round8(r_img + cfg.channels)
    r_w1 = _round8(r_tok + cfg.vocab)
    r_w2 = _round8(r_w1 + cfg.image_embedding)
    r_cen = _round8(r_w2 + cfg.projection_dim)
    rows = _round8(r_cen + 2 * cfg.num_clusters)
    width = max(cfg.image_embedding, cfg.text_embedding, 2 * cfg.projection_dim)
    return dict(r_img=r_img, r_tok=r_tok, r_w1=r_w1, r_w2=r_w2,
                r_cen=r_cen, rows=rows, width=width)


# ------------------------------ fused kernel --------------------------------
def _cloc_fused_kernel(img_ref, tok_ref, w_ref, b_ref, o_ref, *, cfg, lay):
    f32 = jnp.float32
    C, S, V = cfg.channels, cfg.seq, cfg.vocab
    IE, TE = cfg.image_embedding, cfg.text_embedding
    P, K = cfg.projection_dim, cfg.num_clusters
    B = tok_ref.shape[0]
    HW = img_ref.shape[1] // C
    temp = float(cfg.temperature)
    cw = float(cfg.cluster_weight)
    consw = float(cfg.consistency_weight)

    def mm(a, b):                      # default precision (review #10)
        return jnp.dot(a, b, preferred_element_type=f32)

    def mm_bt(a, b):                   # a @ b.T without an explicit transpose
        return lax.dot_general(a, b, (((1,), (1,)), ((), ())),
                               preferred_element_type=f32)

    # ---- unpack the two parameter slabs (static slices, free) --------------
    w_img = w_ref[lay["r_img"]:lay["r_img"] + C, 0:IE]     # [C, IE]
    w_tok = w_ref[lay["r_tok"]:lay["r_tok"] + V, 0:TE]     # [V, TE] = tok_emb @ txt_enc_w (host fold)
    w1 = w_ref[lay["r_w1"]:lay["r_w1"] + IE, 0:2 * P]      # [IE, 2P] = [ip_w1 | tp_w1]
    w2 = w_ref[lay["r_w2"]:lay["r_w2"] + P, 0:2 * P]       # [P, 2P]  = [ip_w2 | tp_w2]
    cen = w_ref[lay["r_cen"]:lay["r_cen"] + 2 * K, 0:P]    # [2K, P]  = [img_centers ; txt_centers]

    bv = b_ref[...]                                        # [8, 64]
    img_enc_b = bv[0:1, 0:IE]
    txt_enc_b = bv[1:2, 0:TE]
    b1 = bv[2:2 + 2 * B, 0:P]                              # [2B, P]: rows 0:B img head, B:2B txt head
    b2 = bv[2:2 + 2 * B, P:2 * P]
    gam = bv[2:2 + 2 * B, 2 * P:3 * P]
    bet = bv[2:2 + 2 * B, 3 * P:4 * P]

    # ---- image encoder stand-in: global average pool + linear + ReLU -------
    # TODO(synk): stand-in for the timm backbone (pretrained, global_pool='avg').
    x_img = img_ref[...]                                   # [B, C*HW]
    terms = [jnp.sum(x_img[:, c * HW:(c + 1) * HW], axis=-1, keepdims=True)
             * w_img[c:c + 1, :] for c in range(C)]        # pooled matmul as C broadcast FMAs
    image_pre = functools.reduce(lambda a, b: a + b, terms) * (1.0 / HW)
    image_features = jnp.maximum(image_pre + img_enc_b, 0.0)        # [B, IE]

    # ---- text encoder stand-in: embed -> masked mean pool -> linear --------
    # TODO(synk): stand-in for DistilBERT (last_hidden_state[:, 0, :]).
    tok = tok_ref[...]                                     # [B, 2S] int32 (ids | mask)
    ids = tok[:, 0:S]
    mask = tok[:, S:2 * S].astype(f32)
    viota = lax.broadcasted_iota(jnp.int32, (B, S, V), 2)
    # attention mask fused into the one-hot compare (review #9)
    tok_w = jnp.sum(jnp.where(viota == ids[:, :, None], mask[:, :, None], 0.0),
                    axis=1)                                # [B, V]
    denom = jnp.maximum(jnp.sum(mask, axis=1, keepdims=True), 1.0)
    text_features = mm(tok_w, w_tok) * (1.0 / denom) + txt_enc_b     # [B, TE], exact divide

    # ---- both projection heads in one pass (review #4) ----------------------
    feats = jnp.concatenate([image_features, text_features], axis=0)  # [2B, IE]
    row_is_img = lax.broadcasted_iota(jnp.int32, (2 * B, 1), 0) < B   # [2B, 1]

    z1 = mm(feats, w1)                                                # [2B, 2P]
    proj = jnp.where(row_is_img, z1[:, 0:P], z1[:, P:2 * P]) + b1     # [2B, P]
    h = 0.5 * proj * (1.0 + lax.erf(proj * 0.7071067811865475))       # exact GELU (nn.GELU)
    z2 = mm(h, w2)                                                    # [2B, 2P]
    y = jnp.where(row_is_img, z2[:, 0:P], z2[:, P:2 * P]) + b2
    r = y + proj                                                      # dropout = identity (eval)
    mu = jnp.mean(r, axis=-1, keepdims=True)
    var = jnp.mean((r - mu) ** 2, axis=-1, keepdims=True)
    emb = (r - mu) * lax.rsqrt(var + 1e-5) * gam + bet                # [2B, P]; rows 0:B = image_embeddings

    # ---- merged similarity Gram matrix (review #2) --------------------------
    g = mm_bt(emb, emb)                                               # [2B, 2B]
    images_similarity = g[0:B, 0:B]
    texts_similarity = g[B:2 * B, B:2 * B]
    logits = g[B:2 * B, 0:B] * (1.0 / temp)                           # text @ image.T / T

    # ---- merged cluster heads (review #3) ------------------------------------
    xc = mm_bt(emb, cen)                                              # [2B, 2K]
    x2 = jnp.sum(emb * emb, axis=-1, keepdims=True)                   # [2B, 1]
    c2 = jnp.sum(cen * cen, axis=-1)[None, :]                         # [1, 2K]
    ns = (x2 + jnp.where(row_is_img, c2[:, 0:K], c2[:, K:2 * K])
          - 2.0 * jnp.where(row_is_img, xc[:, 0:K], xc[:, K:2 * K]))  # [2B, K]
    # shift by the row-min before exp: cancels in the normalization, avoids 0/0
    ns = ns - jnp.min(ns, axis=-1, keepdims=True)
    sim = jnp.exp(-0.5 * ns)
    clusters = sim / jnp.sum(sim, axis=-1, keepdims=True)             # [2B, K], exact divide
    image_clusters = clusters[0:B, :]
    text_clusters = clusters[B:2 * B, :]

    # ---- contrastive + consistency loss -------------------------------------
    ct = mm_bt(image_clusters, text_clusters)                         # [B, B]
    cluster_targets = ct / jnp.sum(ct, axis=-1, keepdims=True)
    feature_targets = jax.nn.softmax(
        (images_similarity + texts_similarity) * (0.5 * temp), axis=-1)
    targets = (1.0 - cw) * feature_targets + cw * cluster_targets

    texts_loss = jnp.sum(-targets * jax.nn.log_softmax(logits, axis=-1),
                         axis=1, keepdims=True)                       # [B, 1]
    images_loss = jnp.sum(-targets * jax.nn.log_softmax(logits, axis=0),
                          axis=0, keepdims=True)                      # [1, B] == xent(logits.T, targets.T)
    contrastive = 0.5 * (jnp.mean(images_loss) + jnp.mean(texts_loss))
    mse = jnp.mean((image_clusters - text_clusters) ** 2)
    total = contrastive + consw * mse
    o_ref[...] = total[None, None]


# ------------------------------ parameters ---------------------------------
def init_params(cfg, key):
    ks = jax.random.split(key, 16)

    def lin(kw, kb, din, dout, scale=0.05):
        return (scale * jax.random.normal(kw, (din, dout), jnp.float32),
                scale * jax.random.normal(kb, (1, dout), jnp.float32))

    params = {}
    # stand-in encoders
    params["img_enc_w"], params["img_enc_b"] = lin(ks[0], ks[1], cfg.channels,
                                                   cfg.image_embedding, 0.2)
    params["tok_emb"] = 0.1 * jax.random.normal(ks[2], (cfg.vocab, cfg.tok_dim),
                                                jnp.float32)
    params["txt_enc_w"], params["txt_enc_b"] = lin(ks[3], ks[4], cfg.tok_dim,
                                                   cfg.text_embedding, 0.2)
    # projection heads
    for name, emb, k0 in (("img_proj", cfg.image_embedding, 5),
                          ("txt_proj", cfg.text_embedding, 9)):
        w1, b1 = lin(ks[k0], ks[k0 + 1], emb, cfg.projection_dim)
        w2, b2 = lin(ks[k0 + 2], ks[k0 + 3], cfg.projection_dim, cfg.projection_dim)
        params[name] = dict(
            w1=w1, b1=b1, w2=w2, b2=b2,
            gamma=jnp.ones((1, cfg.projection_dim), jnp.float32),
            beta=jnp.zeros((1, cfg.projection_dim), jnp.float32))
    # cluster heads (xavier-ish deterministic init)
    params["img_centers"] = 0.3 * jax.random.normal(
        ks[13], (cfg.num_clusters, cfg.projection_dim), jnp.float32)
    params["txt_centers"] = 0.3 * jax.random.normal(
        ks[14], (cfg.num_clusters, cfg.projection_dim), jnp.float32)
    return params


def pack_params(cfg, params):
    """Pack all parameters into two f32 slabs (review #1), done once at init."""
    assert cfg.image_embedding == cfg.text_embedding
    lay = _slab_layout(cfg)
    B, P = cfg.batch, cfg.projection_dim
    ip, tp = params["img_proj"], params["txt_proj"]

    tok_txt = params["tok_emb"] @ params["txt_enc_w"]                 # [V, TE] host fold
    w1_both = jnp.concatenate([ip["w1"], tp["w1"]], axis=1)           # [IE, 2P]
    w2_both = jnp.concatenate([ip["w2"], tp["w2"]], axis=1)           # [P, 2P]
    centers = jnp.concatenate([params["img_centers"], params["txt_centers"]], axis=0)

    wslab = jnp.zeros((lay["rows"], lay["width"]), jnp.float32)
    wslab = wslab.at[lay["r_img"]:lay["r_img"] + cfg.channels,
                     0:cfg.image_embedding].set(params["img_enc_w"])
    wslab = wslab.at[lay["r_tok"]:lay["r_tok"] + cfg.vocab,
                     0:cfg.text_embedding].set(tok_txt)
    wslab = wslab.at[lay["r_w1"]:lay["r_w1"] + cfg.image_embedding, 0:2 * P].set(w1_both)
    wslab = wslab.at[lay["r_w2"]:lay["r_w2"] + P, 0:2 * P].set(w2_both)
    wslab = wslab.at[lay["r_cen"]:lay["r_cen"] + 2 * cfg.num_clusters, 0:P].set(centers)

    def stack_rows(a, b):  # [1,P],[1,P] -> [2B,P]: image rows then text rows
        return jnp.concatenate([jnp.tile(a, (B, 1)), jnp.tile(b, (B, 1))], axis=0)

    bwidth = max(cfg.image_embedding, cfg.text_embedding, 4 * P)
    bslab = jnp.zeros((_round8(2 + 2 * B), bwidth), jnp.float32)
    bslab = bslab.at[0:1, 0:cfg.image_embedding].set(params["img_enc_b"])
    bslab = bslab.at[1:2, 0:cfg.text_embedding].set(params["txt_enc_b"])
    bslab = bslab.at[2:2 + 2 * B, 0:P].set(stack_rows(ip["b1"], tp["b1"]))
    bslab = bslab.at[2:2 + 2 * B, P:2 * P].set(stack_rows(ip["b2"], tp["b2"]))
    bslab = bslab.at[2:2 + 2 * B, 2 * P:3 * P].set(stack_rows(ip["gamma"], tp["gamma"]))
    bslab = bslab.at[2:2 + 2 * B, 3 * P:4 * P].set(stack_rows(ip["beta"], tp["beta"]))
    return wslab, bslab


# ------------------------------ forward pass --------------------------------
def cloc_forward(cfg, wslab, bslab, batch):
    lay = _slab_layout(cfg)
    B, C, H, W = batch["image"].shape
    # NCHW -> [B, C*H*W]: contiguous reshape only (no transpose), H*W on lanes.
    img = batch["image"].reshape(B, C * H * W)
    # ids + mask packed into one int32 array (review #1)
    tok = jnp.concatenate([batch["input_ids"].astype(jnp.int32),
                           batch["attention_mask"].astype(jnp.int32)], axis=1)

    kernel = functools.partial(_cloc_fused_kernel, cfg=cfg, lay=lay)
    vmem = pl.BlockSpec(memory_space=pltpu.MemorySpace.VMEM)

    # TODO(synk): when scoring many batches per step, stack them on a leading
    # axis and add grid=(N,) (per-sample specs indexed by n; constant index_map
    # for the two parameter slabs so they stay resident) together with
    # compiler_params=pltpu.CompilerParams(dimension_semantics=("parallel",))
    # to engage v7x's second TensorCore (reviews #7/#8).
    out = pl.pallas_call(
        kernel,
        out_shape=jax.ShapeDtypeStruct((1, 1), jnp.float32),
        in_specs=[vmem, vmem, vmem, vmem],
        out_specs=vmem,
    )(img, tok, wslab, bslab)
    return out[0, 0]


# --------------------------------- main --------------------------------------
if __name__ == "__main__":
    cfg = Cfg()
    key = jax.random.PRNGKey(0)
    k_par, k_img, k_ids = jax.random.split(key, 3)

    params = init_params(cfg, k_par)
    wslab, bslab = pack_params(cfg, params)

    batch = {
        "image": jax.random.normal(
            k_img, (cfg.batch, cfg.channels, cfg.height, cfg.width), jnp.float32),
        "input_ids": jax.random.randint(
            k_ids, (cfg.batch, cfg.seq), 0, cfg.vocab, jnp.int32),
        "attention_mask": jnp.array(
            [[1] * cfg.seq, [1] * (cfg.seq - 3) + [0] * 3], jnp.int32),
    }

    loss_fn = jax.jit(functools.partial(cloc_forward, cfg))
    loss = loss_fn(wslab, bslab, batch)
    jax.block_until_ready(loss)
    print("KERNEL_OK")
</pallas_src>

<mosaic_0001>
module attributes {stable_mosaic.version = 11 : i64} {
  func.func @_cloc_fused_kernel(%arg0: memref<2x1024xf32, #tpu.memory_space<vmem>>, %arg1: memref<2x16xi32, #tpu.memory_space<vmem>>, %arg2: memref<136x32xf32, #tpu.memory_space<vmem>>, %arg3: memref<8x64xf32, #tpu.memory_space<vmem>>, %arg4: memref<1x1xf32, #tpu.memory_space<vmem>>) attributes {dimension_semantics = [], scalar_prefetch = 0 : i64, scratch_operands = 0 : i64, tpu.core_type = #tpu.core_type<tc>} {
    %c0 = arith.constant 0 : index
    %c0_0 = arith.constant 0 : index
    %0 = vector.load %arg2[%c0, %c0_0] : memref<136x32xf32, #tpu.memory_space<vmem>>, vector<4x32xf32>
    %c8 = arith.constant 8 : index
    %c0_1 = arith.constant 0 : index
    %1 = vector.load %arg2[%c8, %c0_1] : memref<136x32xf32, #tpu.memory_space<vmem>>, vector<64x32xf32>
    %c72 = arith.constant 72 : index
    %c0_2 = arith.constant 0 : index
    %2 = vector.load %arg2[%c72, %c0_2] : memref<136x32xf32, #tpu.memory_space<vmem>>, vector<32x32xf32>
    %c104 = arith.constant 104 : index
    %c0_3 = arith.constant 0 : index
    %3 = vector.load %arg2[%c104, %c0_3] : memref<136x32xf32, #tpu.memory_space<vmem>>, vector<16x32xf32>
    %c120 = arith.constant 120 : index
    %c0_4 = arith.constant 0 : index
    %4 = vector.load %arg2[%c120, %c0_4] : memref<136x32xf32, #tpu.memory_space<vmem>>, vector<16x16xf32>
    %c0_5 = arith.constant 0 : index
    %c0_6 = arith.constant 0 : index
    %5 = vector.load %arg3[%c0_5, %c0_6] : memref<8x64xf32, #tpu.memory_space<vmem>>, vector<8x64xf32>
    %6 = vector.extract_strided_slice %5 {offsets = [0, 0], sizes = [1, 32], strides = [1, 1]} : vector<8x64xf32> to vector<1x32xf32>
    %7 = vector.extract_strided_slice %5 {offsets = [1, 0], sizes = [1, 32], strides = [1, 1]} : vector<8x64xf32> to vector<1x32xf32>
    %8 = vector.extract_strided_slice %5 {offsets = [2, 0], sizes = [4, 16], strides = [1, 1]} : vector<8x64xf32> to vector<4x16xf32>
    %9 = vector.extract_strided_slice %5 {offsets = [2, 16], sizes = [4, 16], strides = [1, 1]} : vector<8x64xf32> to vector<4x16xf32>
    %10 = vector.extract_strided_slice %5 {offsets = [2, 32], sizes = [4, 16], strides = [1, 1]} : vector<8x64xf32> to vector<4x16xf32>
    %11 = vector.extract_strided_slice %5 {offsets = [2, 48], sizes = [4, 16], strides = [1, 1]} : vector<8x64xf32> to vector<4x16xf32>
    %c0_7 = arith.constant 0 : index
    %c0_8 = arith.constant 0 : index
    %12 = vector.load %arg0[%c0_7, %c0_8] : memref<2x1024xf32, #tpu.memory_space<vmem>>, vector<2x1024xf32>
    %13 = vector.extract_strided_slice %12 {offsets = [0, 0], sizes = [2, 256], strides = [1, 1]} : vector<2x1024xf32> to vector<2x256xf32>
    %cst = arith.constant dense<0.000000e+00> : vector<2xf32>
    %14 = vector.multi_reduction <add>, %13, %cst [1] : vector<2x256xf32> to vector<2xf32>
    %15 = vector.shape_cast %14 : vector<2xf32> to vector<2x1xf32>
    %16 = vector.extract_strided_slice %0 {offsets = [0, 0], sizes = [1, 32], strides = [1, 1]} : vector<4x32xf32> to vector<1x32xf32>
    %17 = vector.broadcast %15 : vector<2x1xf32> to vector<2x32xf32>
    %18 = vector.broadcast %16 : vector<1x32xf32> to vector<2x32xf32>
    %19 = arith.mulf %17, %18 : vector<2x32xf32>
    %20 = vector.extract_strided_slice %12 {offsets = [0, 256], sizes = [2, 256], strides = [1, 1]} : vector<2x1024xf32> to vector<2x256xf32>
    %cst_9 = arith.constant dense<0.000000e+00> : vector<2xf32>
    %21 = vector.multi_reduction <add>, %20, %cst_9 [1] : vector<2x256xf32> to vector<2xf32>
    %22 = vector.shape_cast %21 : vector<2xf32> to vector<2x1xf32>
    %23 = vector.extract_strided_slice %0 {offsets = [1, 0], sizes = [1, 32], strides = [1, 1]} : vector<4x32xf32> to vector<1x32xf32>
    %24 = vector.broadcast %22 : vector<2x1xf32> to vector<2x32xf32>
    %25 = vector.broadcast %23 : vector<1x32xf32> to vector<2x32xf32>
    %26 = arith.mulf %24, %25 : vector<2x32xf32>
    %27 = vector.extract_strided_slice %12 {offsets = [0, 512], sizes = [2, 256], strides = [1, 1]} : vector<2x1024xf32> to vector<2x256xf32>
    %cst_10 = arith.constant dense<0.000000e+00> : vector<2xf32>
    %28 = vector.multi_reduction <add>, %27, %cst_10 [1] : vector<2x256xf32> to vector<2xf32>
    %29 = vector.shape_cast %28 : vector<2xf32> to vector<2x1xf32>
    %30 = vector.extract_strided_slice %0 {offsets = [2, 0], sizes = [1, 32], strides = [1, 1]} : vector<4x32xf32> to vector<1x32xf32>
    %31 = vector.broadcast %29 : vector<2x1xf32> to vector<2x32xf32>
    %32 = vector.broadcast %30 : vector<1x32xf32> to vector<2x32xf32>
    %33 = arith.mulf %31, %32 : vector<2x32xf32>
    %34 = vector.extract_strided_slice %12 {offsets = [0, 768], sizes = [2, 256], strides = [1, 1]} : vector<2x1024xf32> to vector<2x256xf32>
    %cst_11 = arith.constant dense<0.000000e+00> : vector<2xf32>
    %35 = vector.multi_reduction <add>, %34, %cst_11 [1] : vector<2x256xf32> to vector<2xf32>
    %36 = vector.shape_cast %35 : vector<2xf32> to vector<2x1xf32>
    %37 = vector.extract_strided_slice %0 {offsets = [3, 0], sizes = [1, 32], strides = [1, 1]} : vector<4x32xf32> to vector<1x32xf32>
    %38 = vector.broadcast %36 : vector<2x1xf32> to vector<2x32xf32>
    %39 = vector.broadcast %37 : vector<1x32xf32> to vector<2x32xf32>
    %40 = arith.mulf %38, %39 : vector<2x32xf32>
    %41 = arith.addf %19, %26 : vector<2x32xf32>
    %42 = arith.addf %41, %33 : vector<2x32xf32>
    %43 = arith.addf %42, %40 : vector<2x32xf32>
    %cst_12 = arith.constant 3.906250e-03 : f32
    %44 = vector.broadcast %cst_12 : f32 to vector<2x32xf32>
    %45 = arith.mulf %43, %44 : vector<2x32xf32>
    %46 = vector.broadcast %6 : vector<1x32xf32> to vector<2x32xf32>
    %47 = arith.addf %45, %46 : vector<2x32xf32>
    %cst_13 = arith.constant 0.000000e+00 : f32
    %48 = vector.broadcast %cst_13 : f32 to vector<2x32xf32>
    %49 = arith.maximumf %47, %48 : vector<2x32xf32>
    %c0_14 = arith.constant 0 : index
    %c0_15 = arith.constant 0 : index
    %50 = vector.load %arg1[%c0_14, %c0_15] : memref<2x16xi32, #tpu.memory_space<vmem>>, vector<2x16xi32>
    %51 = vector.extract_strided_slice %50 {offsets = [0, 0], sizes = [2, 8], strides = [1, 1]} : vector<2x16xi32> to vector<2x8xi32>
    %52 = vector.extract_strided_slice %50 {offsets = [0, 8], sizes = [2, 8], strides = [1, 1]} : vector<2x16xi32> to vector<2x8xi32>
    %53 = arith.sitofp %52 : vector<2x8xi32> to vector<2x8xf32>
    %54 = tpu.iota {dimensions = array<i32: 2>} : vector<2x8x64xi32>
    %55 = vector.shape_cast %51 : vector<2x8xi32> to vector<2x8x1xi32>
    %56 = vector.broadcast %55 : vector<2x8x1xi32> to vector<2x8x64xi32>
    %57 = arith.cmpi eq, %54, %56 : vector<2x8x64xi32>
    %58 = vector.shape_cast %53 : vector<2x8xf32> to vector<2x8x1xf32>
    %cst_16 = arith.constant 0.000000e+00 : f32
    %59 = vector.shape_cast %58 : vector<2x8x1xf32> to vector<2x8x1xf32>
    %60 = vector.broadcast %59 : vector<2x8x1xf32> to vector<2x8x64xf32>
    %61 = vector.broadcast %cst_16 : f32 to vector<2x8x64xf32>
    %62 = arith.select %57, %60, %61 : vector<2x8x64xi1>, vector<2x8x64xf32>
    %cst_17 = arith.constant dense<0.000000e+00> : vector<2x64xf32>
    %63 = vector.multi_reduction <add>, %62, %cst_17 [1] : vector<2x8x64xf32> to vector<2x64xf32>
    %cst_18 = arith.constant dense<0.000000e+00> : vector<2xf32>
    %64 = vector.multi_reduction <add>, %53, %cst_18 [1] : vector<2x8xf32> to vector<2xf32>
    %65 = vector.shape_cast %64 : vector<2xf32> to vector<2x1xf32>
    %cst_19 = arith.constant 1.000000e+00 : f32
    %66 = vector.broadcast %cst_19 : f32 to vector<2x1xf32>
    %67 = arith.maximumf %65, %66 : vector<2x1xf32>
    %cst_20 = arith.constant dense<0.000000e+00> : vector<2x32xf32>
    %68 = tpu.matmul %63, %1, %cst_20 {dimension_numbers = #tpu.dot_dimension_numbers<[1], [0], [0], [1], [0, 0, 1, 1], [], []>} : vector<2x64xf32>, vector<64x32xf32>, vector<2x32xf32> -> vector<2x32xf32>
    %cst_21 = arith.constant 1.000000e+00 : f32
    %69 = vector.broadcast %cst_21 : f32 to vector<2x1xf32>
    %70 = arith.divf %69, %67 : vector<2x1xf32>
    %71 = vector.broadcast %70 : vector<2x1xf32> to vector<2x32xf32>
    %72 = arith.mulf %68, %71 : vector<2x32xf32>
    %73 = vector.broadcast %7 : vector<1x32xf32> to vector<2x32xf32>
    %74 = arith.addf %72, %73 : vector<2x32xf32>
    %75 = tpu.concatenate %49, %74 in 0 : vector<2x32xf32>, vector<2x32xf32> -> vector<4x32xf32>
    %76 = tpu.iota {dimensions = array<i32: 0>} : vector<4x1xi32>
    %c2_i32 = arith.constant 2 : i32
    %77 = vector.broadcast %c2_i32 : i32 to vector<4x1xi32>
    %78 = arith.cmpi slt, %76, %77 : vector<4x1xi32>
    %cst_22 = arith.constant dense<0.000000e+00> : vector<4x32xf32>
    %79 = tpu.matmul %75, %2, %cst_22 {dimension_numbers = #tpu.dot_dimension_numbers<[1], [0], [0], [1], [0, 0, 1, 1], [], []>} : vector<4x32xf32>, vector<32x32xf32>, vector<4x32xf32> -> vector<4x32xf32>
    %80 = vector.extract_strided_slice %79 {offsets = [0, 0], sizes = [4, 16], strides = [1, 1]} : vector<4x32xf32> to vector<4x16xf32>
    %81 = vector.extract_strided_slice %79 {offsets = [0, 16], sizes = [4, 16], strides = [1, 1]} : vector<4x32xf32> to vector<4x16xf32>
    %82 = vector.shape_cast %78 : vector<4x1xi1> to vector<4x1xi1>
    %83 = vector.broadcast %82 : vector<4x1xi1> to vector<4x16xi1>
    %84 = arith.select %83, %80, %81 : vector<4x16xi1>, vector<4x16xf32>
    %85 = arith.addf %84, %8 : vector<4x16xf32>
    %cst_23 = arith.constant 5.000000e-01 : f32
    %86 = vector.broadcast %cst_23 : f32 to vector<4x16xf32>
    %87 = arith.mulf %86, %85 : vector<4x16xf32>
    %cst_24 = arith.constant 0.707106769 : f32
    %88 = vector.broadcast %cst_24 : f32 to vector<4x16xf32>
    %89 = arith.mulf %85, %88 : vector<4x16xf32>
    %90 = math.erf %89 : vector<4x16xf32>
    %cst_25 = arith.constant 1.000000e+00 : f32
    %91 = vector.broadcast %cst_25 : f32 to vector<4x16xf32>
    %92 = arith.addf %91, %90 : vector<4x16xf32>
    %93 = arith.mulf %87, %92 : vector<4x16xf32>
    %cst_26 = arith.constant dense<0.000000e+00> : vector<4x32xf32>
    %94 = tpu.matmul %93, %3, %cst_26 {dimension_numbers = #tpu.dot_dimension_numbers<[1], [0], [0], [1], [0, 0, 1, 1], [], []>} : vector<4x16xf32>, vector<16x32xf32>, vector<4x32xf32> -> vector<4x32xf32>
    %95 = vector.extract_strided_slice %94 {offsets = [0, 0], sizes = [4, 16], strides = [1, 1]} : vector<4x32xf32> to vector<4x16xf32>
    %96 = vector.extract_strided_slice %94 {offsets = [0, 16], sizes = [4, 16], strides = [1, 1]} : vector<4x32xf32> to vector<4x16xf32>
    %97 = vector.shape_cast %78 : vector<4x1xi1> to vector<4x1xi1>
    %98 = vector.broadcast %97 : vector<4x1xi1> to vector<4x16xi1>
    %99 = arith.select %98, %95, %96 : vector<4x16xi1>, vector<4x16xf32>
    %100 = arith.addf %99, %9 : vector<4x16xf32>
    %101 = arith.addf %100, %85 : vector<4x16xf32>
    %cst_27 = arith.constant dense<0.000000e+00> : vector<4xf32>
    %102 = vector.multi_reduction <add>, %101, %cst_27 [1] : vector<4x16xf32> to vector<4xf32>
    %103 = vector.shape_cast %102 : vector<4xf32> to vector<4x1xf32>
    %cst_28 = arith.constant 1.600000e+01 : f32
    %104 = vector.broadcast %cst_28 : f32 to vector<4x1xf32>
    %105 = arith.divf %103, %104 : vector<4x1xf32>
    %106 = vector.broadcast %105 : vector<4x1xf32> to vector<4x16xf32>
    %107 = arith.subf %101, %106 : vector<4x16xf32>
    %108 = arith.mulf %107, %107 : vector<4x16xf32>
    %cst_29 = arith.constant dense<0.000000e+00> : vector<4xf32>
    %109 = vector.multi_reduction <add>, %108, %cst_29 [1] : vector<4x16xf32> to vector<4xf32>
    %110 = vector.shape_cast %109 : vector<4xf32> to vector<4x1xf32>
    %cst_30 = arith.constant 1.600000e+01 : f32
    %111 = vector.broadcast %cst_30 : f32 to vector<4x1xf32>
    %112 = arith.divf %110, %111 : vector<4x1xf32>
    %113 = vector.broadcast %105 : vector<4x1xf32> to vector<4x16xf32>
    %114 = arith.subf %101, %113 : vector<4x16xf32>
    %cst_31 = arith.constant 9.99999974E-6 : f32
    %115 = vector.broadcast %cst_31 : f32 to vector<4x1xf32>
    %116 = arith.addf %112, %115 : vector<4x1xf32>
    %117 = math.rsqrt %116 : vector<4x1xf32>
    %118 = vector.broadcast %117 : vector<4x1xf32> to vector<4x16xf32>
    %119 = arith.mulf %114, %118 : vector<4x16xf32>
    %120 = arith.mulf %119, %10 : vector<4x16xf32>
    %121 = arith.addf %120, %11 : vector<4x16xf32>
    %cst_32 = arith.constant dense<0.000000e+00> : vector<4x4xf32>
    %122 = tpu.matmul %121, %121, %cst_32 {dimension_numbers = #tpu.dot_dimension_numbers<[1], [1], [0], [0], [0, 0, 1, 0], [], []>} : vector<4x16xf32>, vector<4x16xf32>, vector<4x4xf32> -> vector<4x4xf32>
    %123 = vector.extract_strided_slice %122 {offsets = [0, 0], sizes = [2, 2], strides = [1, 1]} : vector<4x4xf32> to vector<2x2xf32>
    %124 = vector.extract_strided_slice %122 {offsets = [2, 2], sizes = [2, 2], strides = [1, 1]} : vector<4x4xf32> to vector<2x2xf32>
    %125 = vector.extract_strided_slice %122 {offsets = [2, 0], sizes = [2, 2], strides = [1, 1]} : vector<4x4xf32> to vector<2x2xf32>
    %cst_33 = arith.constant 1.000000e+00 : f32
    %126 = vector.broadcast %cst_33 : f32 to vector<2x2xf32>
    %127 = arith.mulf %125, %126 : vector<2x2xf32>
    %cst_34 = arith.constant dense<0.000000e+00> : vector<4x16xf32>
    %128 = tpu.matmul %121, %4, %cst_34 {dimension_numbers = #tpu.dot_dimension_numbers<[1], [1], [0], [0], [0, 0, 1, 0], [], []>} : vector<4x16xf32>, vector<16x16xf32>, vector<4x16xf32> -> vector<4x16xf32>
    %129 = arith.mulf %121, %121 : vector<4x16xf32>
    %cst_35 = arith.constant dense<0.000000e+00> : vector<4xf32>
    %130 = vector.multi_reduction <add>, %129, %cst_35 [1] : vector<4x16xf32> to vector<4xf32>
    %131 = vector.shape_cast %130 : vector<4xf32> to vector<4x1xf32>
    %132 = arith.mulf %4, %4 : vector<16x16xf32>
    %cst_36 = arith.constant dense<0.000000e+00> : vector<16xf32>
    %133 = vector.multi_reduction <add>, %132, %cst_36 [1] : vector<16x16xf32> to vector<16xf32>
    %134 = vector.shape_cast %133 : vector<16xf32> to vector<1x16xf32>
    %135 = vector.extract_strided_slice %134 {offsets = [0, 0], sizes = [1, 8], strides = [1, 1]} : vector<1x16xf32> to vector<1x8xf32>
    %136 = vector.extract_strided_slice %134 {offsets = [0, 8], sizes = [1, 8], strides = [1, 1]} : vector<1x16xf32> to vector<1x8xf32>
    %137 = vector.shape_cast %78 : vector<4x1xi1> to vector<4x1xi1>
    %138 = vector.broadcast %137 : vector<4x1xi1> to vector<4x8xi1>
    %139 = vector.shape_cast %135 : vector<1x8xf32> to vector<1x8xf32>
    %140 = vector.broadcast %139 : vector<1x8xf32> to vector<4x8xf32>
    %141 = vector.shape_cast %136 : vector<1x8xf32> to vector<1x8xf32>
    %142 = vector.broadcast %141 : vector<1x8xf32> to vector<4x8xf32>
    %143 = arith.select %138, %140, %142 : vector<4x8xi1>, vector<4x8xf32>
    %144 = vector.broadcast %131 : vector<4x1xf32> to vector<4x8xf32>
    %145 = arith.addf %144, %143 : vector<4x8xf32>
    %146 = vector.extract_strided_slice %128 {offsets = [0, 0], sizes = [4, 8], strides = [1, 1]} : vector<4x16xf32> to vector<4x8xf32>
    %147 = vector.extract_strided_slice %128 {offsets = [0, 8], sizes = [4, 8], strides = [1, 1]} : vector<4x16xf32> to vector<4x8xf32>
    %148 = vector.shape_cast %78 : vector<4x1xi1> to vector<4x1xi1>
    %149 = vector.broadcast %148 : vector<4x1xi1> to vector<4x8xi1>
    %150 = arith.select %149, %146, %147 : vector<4x8xi1>, vector<4x8xf32>
    %cst_37 = arith.constant 2.000000e+00 : f32
    %151 = vector.broadcast %cst_37 : f32 to vector<4x8xf32>
    %152 = arith.mulf %151, %150 : vector<4x8xf32>
    %153 = arith.subf %145, %152 : vector<4x8xf32>
    %cst_38 = arith.constant dense<0x7F800000> : vector<4xf32>
    %154 = vector.multi_reduction <minimumf>, %153, %cst_38 [1] : vector<4x8xf32> to vector<4xf32>
    %155 = vector.shape_cast %154 : vector<4xf32> to vector<4x1xf32>
    %156 = vector.broadcast %155 : vector<4x1xf32> to vector<4x8xf32>
    %157 = arith.subf %153, %156 : vector<4x8xf32>
    %cst_39 = arith.constant -5.000000e-01 : f32
    %158 = vector.broadcast %cst_39 : f32 to vector<4x8xf32>
    %159 = arith.mulf %158, %157 : vector<4x8xf32>
    %160 = math.exp %159 : vector<4x8xf32>
    %cst_40 = arith.constant dense<0.000000e+00> : vector<4xf32>
    %161 = vector.multi_reduction <add>, %160, %cst_40 [1] : vector<4x8xf32> to vector<4xf32>
    %162 = vector.shape_cast %161 : vector<4xf32> to vector<4x1xf32>
    %163 = vector.broadcast %162 : vector<4x1xf32> to vector<4x8xf32>
    %164 = arith.divf %160, %163 : vector<4x8xf32>
    %165 = vector.extract_strided_slice %164 {offsets = [0, 0], sizes = [2, 8], strides = [1, 1]} : vector<4x8xf32> to vector<2x8xf32>
    %166 = vector.extract_strided_slice %164 {offsets = [2, 0], sizes = [2, 8], strides = [1, 1]} : vector<4x8xf32> to vector<2x8xf32>
    %cst_41 = arith.constant dense<0.000000e+00> : vector<2x2xf32>
    %167 = tpu.matmul %165, %166, %cst_41 {dimension_numbers = #tpu.dot_dimension_numbers<[1], [1], [0], [0], [0, 0, 1, 0], [], []>} : vector<2x8xf32>, vector<2x8xf32>, vector<2x2xf32> -> vector<2x2xf32>
    %cst_42 = arith.constant dense<0.000000e+00> : vector<2xf32>
    %168 = vector.multi_reduction <add>, %167, %cst_42 [1] : vector<2x2xf32> to vector<2xf32>
    %169 = vector.shape_cast %168 : vector<2xf32> to vector<2x1xf32>
    %170 = vector.broadcast %169 : vector<2x1xf32> to vector<2x2xf32>
    %171 = arith.divf %167, %170 : vector<2x2xf32>
    %172 = arith.addf %123, %124 : vector<2x2xf32>
    %cst_43 = arith.constant 5.000000e-01 : f32
    %173 = vector.broadcast %cst_43 : f32 to vector<2x2xf32>
    %174 = arith.mulf %172, %173 : vector<2x2xf32>
    %cst_44 = arith.constant dense<0xFF800000> : vector<2xf32>
    %175 = vector.multi_reduction <maximumf>, %174, %cst_44 [1] : vector<2x2xf32> to vector<2xf32>
    %cst_45 = arith.constant 0xFF800000 : f32
    %176 = vector.broadcast %cst_45 : f32 to vector<2xf32>
    %177 = arith.maximumf %176, %175 : vector<2xf32>
    %178 = vector.shape_cast %177 : vector<2xf32> to vector<2x1xf32>
    %179 = vector.broadcast %178 : vector<2x1xf32> to vector<2x2xf32>
    %180 = arith.subf %174, %179 : vector<2x2xf32>
    %181 = math.exp %180 : vector<2x2xf32>
    %cst_46 = arith.constant dense<0.000000e+00> : vector<2xf32>
    %182 = vector.multi_reduction <add>, %181, %cst_46 [1] : vector<2x2xf32> to vector<2xf32>
    %183 = vector.shape_cast %182 : vector<2xf32> to vector<2x1xf32>
    %184 = vector.broadcast %183 : vector<2x1xf32> to vector<2x2xf32>
    %185 = arith.divf %181, %184 : vector<2x2xf32>
    %cst_47 = arith.constant 5.000000e-01 : f32
    %186 = vector.broadcast %cst_47 : f32 to vector<2x2xf32>
    %187 = arith.mulf %186, %185 : vector<2x2xf32>
    %cst_48 = arith.constant 5.000000e-01 : f32
    %188 = vector.broadcast %cst_48 : f32 to vector<2x2xf32>
    %189 = arith.mulf %188, %171 : vector<2x2xf32>
    %190 = arith.addf %187, %189 : vector<2x2xf32>
    %cst_49 = arith.constant 0.000000e+00 : f32
    %191 = vector.broadcast %cst_49 : f32 to vector<2x2xf32>
    %192 = arith.subf %191, %190 : vector<2x2xf32>
    %cst_50 = arith.constant dense<0xFF800000> : vector<2xf32>
    %193 = vector.multi_reduction <maximumf>, %127, %cst_50 [1] : vector<2x2xf32> to vector<2xf32>
    %cst_51 = arith.constant 0xFF800000 : f32
    %194 = vector.broadcast %cst_51 : f32 to vector<2xf32>
    %195 = arith.maximumf %194, %193 : vector<2xf32>
    %196 = vector.shape_cast %195 : vector<2xf32> to vector<2x1xf32>
    %197 = vector.broadcast %196 : vector<2x1xf32> to vector<2x2xf32>
    %198 = arith.subf %127, %197 : vector<2x2xf32>
    %199 = math.exp %198 : vector<2x2xf32>
    %cst_52 = arith.constant dense<0.000000e+00> : vector<2xf32>
    %200 = vector.multi_reduction <add>, %199, %cst_52 [1] : vector<2x2xf32> to vector<2xf32>
    %201 = vector.shape_cast %200 : vector<2xf32> to vector<2x1xf32>
    %202 = math.log %201 : vector<2x1xf32>
    %203 = vector.broadcast %202 : vector<2x1xf32> to vector<2x2xf32>
    %204 = arith.subf %198, %203 : vector<2x2xf32>
    %205 = arith.mulf %192, %204 : vector<2x2xf32>
    %cst_53 = arith.constant dense<0.000000e+00> : vector<2xf32>
    %206 = vector.multi_reduction <add>, %205, %cst_53 [1] : vector<2x2xf32> to vector<2xf32>
    %207 = vector.shape_cast %206 : vector<2xf32> to vector<2x1xf32>
    %cst_54 = arith.constant 0.000000e+00 : f32
    %208 = vector.broadcast %cst_54 : f32 to vector<2x2xf32>
    %209 = arith.subf %208, %190 : vector<2x2xf32>
    %cst_55 = arith.constant dense<0xFF800000> : vector<2xf32>
    %210 = vector.multi_reduction <maximumf>, %127, %cst_55 [0] : vector<2x2xf32> to vector<2xf32>
    %cst_56 = arith.constant 0xFF800000 : f32
    %211 = vector.broadcast %cst_56 : f32 to vector<2xf32>
    %212 = arith.maximumf %211, %210 : vector<2xf32>
    %213 = vector.shape_cast %212 : vector<2xf32> to vector<1x2xf32>
    %214 = vector.broadcast %213 : vector<1x2xf32> to vector<2x2xf32>
    %215 = arith.subf %127, %214 : vector<2x2xf32>
    %216 = math.exp %215 : vector<2x2xf32>
    %cst_57 = arith.constant dense<0.000000e+00> : vector<2xf32>
    %217 = vector.multi_reduction <add>, %216, %cst_57 [0] : vector<2x2xf32> to vector<2xf32>
    %218 = vector.shape_cast %217 : vector<2xf32> to vector<1x2xf32>
    %219 = math.log %218 : vector<1x2xf32>
    %220 = vector.broadcast %219 : vector<1x2xf32> to vector<2x2xf32>
    %221 = arith.subf %215, %220 : vector<2x2xf32>
    %222 = arith.mulf %209, %221 : vector<2x2xf32>
    %cst_58 = arith.constant dense<0.000000e+00> : vector<2xf32>
    %223 = vector.multi_reduction <add>, %222, %cst_58 [0] : vector<2x2xf32> to vector<2xf32>
    %224 = vector.shape_cast %223 : vector<2xf32> to vector<1x2xf32>
    %225 = vector.shape_cast %224 : vector<1x2xf32> to vector<1x1x2xf32>
    %cst_59 = arith.constant dense<0.000000e+00> : vector<1xf32>
    %226 = vector.multi_reduction <add>, %225, %cst_59 [1, 2] : vector<1x1x2xf32> to vector<1xf32>
    %227 = vector.shape_cast %226 : vector<1xf32> to vector<1x1x1xf32>
    %228 = vector.extract %227[0, 0, 0] : f32 from vector<1x1x1xf32>
    %cst_60 = arith.constant 2.000000e+00 : f32
    %229 = arith.divf %228, %cst_60 : f32
    %230 = vector.shape_cast %207 : vector<2x1xf32> to vector<1x2x1xf32>
    %cst_61 = arith.constant dense<0.000000e+00> : vector<1xf32>
    %231 = vector.multi_reduction <add>, %230, %cst_61 [1, 2] : vector<1x2x1xf32> to vector<1xf32>
    %232 = vector.shape_cast %231 : vector<1xf32> to vector<1x1x1xf32>
    %233 = vector.extract %232[0, 0, 0] : f32 from vector<1x1x1xf32>
    %cst_62 = arith.constant 2.000000e+00 : f32
    %234 = arith.divf %233, %cst_62 : f32
    %235 = arith.addf %229, %234 : f32
    %cst_63 = arith.constant 5.000000e-01 : f32
    %236 = arith.mulf %cst_63, %235 : f32
    %237 = arith.subf %165, %166 : vector<2x8xf32>
    %238 = arith.mulf %237, %237 : vector<2x8xf32>
    %239 = vector.shape_cast %238 : vector<2x8xf32> to vector<1x2x8xf32>
    %cst_64 = arith.constant dense<0.000000e+00> : vector<1xf32>
    %240 = vector.multi_reduction <add>, %239, %cst_64 [1, 2] : vector<1x2x8xf32> to vector<1xf32>
    %241 = vector.shape_cast %240 : vector<1xf32> to vector<1x1x1xf32>
    %242 = vector.extract %241[0, 0, 0] : f32 from vector<1x1x1xf32>
    %cst_65 = arith.constant 1.600000e+01 : f32
    %243 = arith.divf %242, %cst_65 : f32
    %cst_66 = arith.constant 1.000000e+00 : f32
    %244 = arith.mulf %cst_66, %243 : f32
    %245 = arith.addf %236, %244 : f32
    %246 = vector.broadcast %245 : f32 to vector<1x1xf32>
    %c0_67 = arith.constant 0 : index
    %c0_68 = arith.constant 0 : index
    %247 = vector.load %arg4[%c0_67, %c0_68] : memref<1x1xf32, #tpu.memory_space<vmem>>, vector<1x1xf32>
    tpu.vector_store %arg4[%c0_67, %c0_68], %246 {strides = array<i32>} : memref<1x1xf32, #tpu.memory_space<vmem>>, vector<1x1xf32>,
    return
  }
}

</mosaic_0001>

<llo_original>
// kernel: cloc_forward.1
$region0: #{cloc_forward.1}
  #allocation0 [shape = 'u32[]', space=smem, size = 0x4, offset = 0x4, fixed_abs, tag = 'smem constant byte address 0x4 - core index']
  #allocation1 [shape = 'u32[144,128]{1,0:T(1,128)}', space=vmem, size = 0x12000, scoped, tag = 'internal scratch']
  %s0 = inlined_call_operand.vmem [shape: f32[2,1024], index: 0, kind: input, shape index: {}]
  %s1 = inlined_call_operand.vmem [shape: s32[2,16], index: 1, kind: input, shape index: {}]
  %s2 = inlined_call_operand.vmem [shape: f32[136,32], index: 2, kind: input, shape index: {}]
  %s3 = inlined_call_operand.vmem [shape: f32[8,64], index: 3, kind: input, shape index: {}]
  %s4 = inlined_call_operand.hbm [shape: f32[1,1], index: 4, kind: output, shape index: {}]
  %s5 = sld [smem:[#allocation0]]
  $region26: #{cloc_forward.1} parent=0
    _
  %s7 = ssub.s32 1, %s5
  %s8 = scalar_select 0, %s7, %s5
  $region1: #{cloc_forward.1} parent=0
    #allocation2 [shape = 'u8[512]{0}', space=vmem, size = 0x400, scoped, tag = 'output window, operand 0, single buffered']
    #allocation3 [shape = 's32[1]{0}', space=sflag, size = 0x4, scoped, tag = 'scoped memory for cloc_forward.1']
    %9 = vsyncpa [#allocation3], 0
    // Predicated region
    $region2: #{cloc_forward.1} parent=1 // pred_check
      _
    $region3: #{cloc_forward.1} parent=1 // pred_check_branch
      %11 = sbr.rel (0) target = $region5
    $region4: #{cloc_forward.1} parent=1 // pred_region
      _
    $region5: #{cloc_forward.1} parent=1 // pred_fallthru
      _
    // Predicated region
    $region6: #{cloc_forward.1} parent=1 // pred_check
      _
    $region7: #{cloc_forward.1} parent=1 // pred_check_branch
      %13 = sbr.rel (0) target = $region9
    $region8: #{cloc_forward.1} parent=1 // pred_region
      _
    $region9: #{cloc_forward.1} parent=1 // pred_fallthru
      _
    // Predicated region
    $region10: #{cloc_forward.1} parent=1 // pred_check
      _
    $region11: #{cloc_forward.1} parent=1 // pred_check_branch
      %15 = sbr.rel (0) target = $region13
    $region12: #{cloc_forward.1} parent=1 // pred_region
      _
    $region13: #{cloc_forward.1} parent=1 // pred_fallthru
      _
    // Predicated region
    $region14: #{cloc_forward.1} parent=1 // pred_check
      _
    $region15: #{cloc_forward.1} parent=1 // pred_check_branch
      %17 = sbr.rel (0) target = $region17
    $region16: #{cloc_forward.1} parent=1 // pred_region
      _
    $region17: #{cloc_forward.1} parent=1 // pred_fallthru
      _
    %v18 = vld [vmem:[%s2] sm:$0xf]
    %v19 = vld [vmem:[%s2 + $0x8] sm:$0xff]
    %v20 = vld [vmem:[%s2 + $0x10] sm:$0xff]
    %v21 = vld [vmem:[%s2 + $0x18] sm:$0xff]
    %v22 = vld [vmem:[%s2 + $0x20] sm:$0xff]
    %v23 = vld [vmem:[%s2 + $0x28] sm:$0xff]
    %v24 = vld [vmem:[%s2 + $0x30] sm:$0xff]
    %v25 = vld [vmem:[%s2 + $0x38] sm:$0xff]
    %v26 = vld [vmem:[%s2 + $0x40] sm:$0xff]
    %v27 = vld [vmem:[%s2 + $0x48] sm:$0xff]
    %v28 = vld [vmem:[%s2 + $0x50] sm:$0xff]
    %v29 = vld [vmem:[%s2 + $0x58] sm:$0xff]
    %v30 = vld [vmem:[%s2 + $0x60] sm:$0xff]
    %v31 = vld [vmem:[%s2 + $0x68] sm:$0xff]
    %v32 = vld [vmem:[%s2 + $0x70] sm:$0xff]
    %v33 = vld [vmem:[%s2 + $0x78] sm:$0xff]
    %v34 = vld [vmem:[%s2 + $0x80] sm:$0xff]
    %v35 = vld [vmem:[%s3] sm:$0xff]
    %v36 = vld [vmem:[%s0] sm:$0xff]
    %v37 = vld [vmem:[%s0 + $0x8] sm:$0xff]
    %v40 = vunpack.c.l.s4 1983009808
    %v41 = vunpack.c.0.s8 %v40
    %v42 = vlaneseq
    %v43 = vshrl.u32 %v42, 7
    %v44 = vsub.s32 %v41, %v43
    %v45 = vrot.slane %v36, %v44
    %v46 = vcombine.high %v45, %v45
    %vm49 = vcmask 1041408
    %v50 = vsel %vm49, %v45, 0.0
    %v51 = vsel %vm49, %v46, 0.0
    %v52 = vadd.f32 %v50, %v51
    %53 = vadd.xlane.f32.xlu0 %v52
    %v54 = vpop.xlane.xlu0 %53
    %v55 = vlaneseq
    %v56 = vshrl.u32 %v55, 7
    %v57 = vsub.s32 0, %v56
    %v58 = vrot.slane %v18, %v57
    %v59 = vmul.f32 %v54, %v58
    %v60 = vcombine.high %v36, %v36
    %v62 = vunpack.c.l.s4 1983009808
    %v63 = vunpack.c.0.s8 %v62
    %v64 = vlaneseq
    %v65 = vshrl.u32 %v64, 7
    %v66 = vsub.s32 %v63, %v65
    %v67 = vrot.slane %v60, %v66
    %v68 = vcombine.high %v67, %v67
    %v71 = vsel %vm49, %v67, 0.0
    %v72 = vsel %vm49, %v68, 0.0
    %v73 = vadd.f32 %v71, %v72
    %74 = vadd.xlane.f32.xlu0 %v73
    %v75 = vpop.xlane.xlu0 %74
    %v76 = vlaneseq
    %v77 = vshrl.u32 %v76, 7
    %v78 = vsub.s32 1, %v77
    %v79 = vrot.slane %v18, %v78
    %v80 = vmul.f32 %v75, %v79
    %v83 = vunpack.c.l.s4 1983009808
    %v84 = vunpack.c.0.s8 %v83
    %v85 = vlaneseq
    %v86 = vshrl.u32 %v85, 7
    %v87 = vsub.s32 %v84, %v86
    %v88 = vrot.slane %v37, %v87
    %v89 = vcombine.high %v88, %v88
    %v92 = vsel %vm49, %v88, 0.0
    %v93 = vsel %vm49, %v89, 0.0
    %v94 = vadd.f32 %v92, %v93
    %95 = vadd.xlane.f32.xlu0 %v94
    %v96 = vpop.xlane.xlu0 %95
    %v97 = vlaneseq
    %v98 = vshrl.u32 %v97, 7
    %v99 = vsub.s32 2, %v98
    %v100 = vrot.slane %v18, %v99
    %v101 = vmul.f32 %v96, %v100
    %v102 = vcombine.high %v37, %v37
    %v104 = vunpack.c.l.s4 1983009808
    %v105 = vunpack.c.0.s8 %v104
    %v106 = vlaneseq
    %v107 = vshrl.u32 %v106, 7
    %v108 = vsub.s32 %v105, %v107
    %v109 = vrot.slane %v102, %v108
    %v110 = vcombine.high %v109, %v109
    %v113 = vsel %vm49, %v109, 0.0
    %v114 = vsel %vm49, %v110, 0.0
    %v115 = vadd.f32 %v113, %v114
    %116 = vadd.xlane.f32.xlu0 %v115
    %v117 = vpop.xlane.xlu0 %116
    %v118 = vlaneseq
    %v119 = vshrl.u32 %v118, 7
    %v120 = vsub.s32 3, %v119
    %v121 = vrot.slane %v18, %v120
    %v122 = vmul.f32 %v117, %v121
    %v123 = vadd.f32 %v59, %v80
    %v124 = vadd.f32 %v123, %v101
    %v125 = vadd.f32 %v124, %v122
    %v126 = vmul.f32 %v125, 0.00390625
    %v127 = vlaneseq
    %v128 = vshrl.u32 %v127, 7
    %v129 = vsub.s32 0, %v128
    %v130 = vrot.slane %v35, %v129
    %v131 = vadd.f32 %v126, %v130
    %v132 = vmax.f32 %v131, 0.0
    %v133 = vld [vmem:[%s1] sm:$0x3]
    %v134 = vcvt.s32.f32 %v133
    %v135 = vlaneseq
    %v136 = vand.u32 %v135, 127
    %v137 = vlaneseq
    %v138 = vshrl.u32 %v137, 7
    %v139 = vsub.s32 0, %v138
    %v140 = vrot.slane %v133, %v139
    %142 = vbcast.lane.b32.xlu0 %v140, 256
    %v143 = vpop.permute.xlu0 %142
    %v144 = vlaneseq
    %v145 = vshrl.u32 %v144, 7
    %v146 = vsub.s32 1, %v145
    %v147 = vrot.slane %v133, %v146
    %149 = vbcast.lane.b32.xlu0 %v147, 256
    %v150 = vpop.permute.xlu0 %149
    %vm151 = vcmp.eq.s32.totalorder %v136, %v143
    %vm152 = vcmp.eq.s32.totalorder %v136, %v150
    %v153 = vlaneseq
    %v154 = vshrl.u32 %v153, 7
    %v155 = vsub.s32 0, %v154
    %v156 = vrot.slane %v134, %v155
    %s158 = sor.u32 256, 8
    %159 = vbcast.lane.b32.xlu0 %v156, %s158
    %v160 = vpop.permute.xlu0 %159
    %v161 = vlaneseq
    %v162 = vshrl.u32 %v161, 7
    %v163 = vsub.s32 1, %v162
    %v164 = vrot.slane %v134, %v163
    %s166 = sor.u32 256, 8
    %167 = vbcast.lane.b32.xlu0 %v164, %s166
    %v168 = vpop.permute.xlu0 %167
    %v169 = vsel %vm151, %v160, 0.0
    %v170 = vsel %vm152, %v168, 0.0
    %vm171 = vcmask 523264
    %v172 = vsel %vm171, %v169, 0.0
    %v173 = vrot.slane %v172, 4
    %v174 = vadd.f32 %v172, %v173
    %v175 = vrot.slane %v174, 2
    %v176 = vadd.f32 %v174, %v175
    %v177 = vrot.slane %v176, 1
    %v178 = vadd.f32 %v176, %v177
    %v179 = vsel %vm171, %v170, 0.0
    %v180 = vrot.slane %v179, 4
    %v181 = vadd.f32 %v179, %v180
    %v182 = vrot.slane %v181, 2
    %v183 = vadd.f32 %v181, %v182
    %v184 = vrot.slane %v183, 1
    %v185 = vadd.f32 %v183, %v184
    %187 = vrot.lane.b32.xlu0 %v134, 120
    %v188 = vpop.permute.xlu0 %187
    %vm190 = vcmask 58368
    %v191 = vsel %vm190, %v188, 0.0
    %192 = vadd.xlane.f32.xlu0 %v191
    %v193 = vpop.xlane.xlu0 %192
    %v194 = vmax.f32 %v193, 1.0
    %vm197 = vcmask 1041409
    %v198 = vsel %vm197, %v185, %v178
    %v199 = vsel %vm171, %v198, 0
    %201 = vmatprep.subr.mxu0 0.0
    %202 = vmatpush1.msra.mxu0 %v19
    %203 = vmatprep.subr.mxu0 0.0
    %204 = vmatpush1.msra.mxu0 %v20
    %205 = vmatprep.subr.mxu0 0.0
    %206 = vmatpush1.msra.mxu0 %v21
    %207 = vmatprep.subr.mxu0 0.0
    %208 = vmatpush1.msra.mxu0 %v22
    %209 = vmatprep.subr.mxu0 0.0
    %210 = vmatpush1.msra.mxu0 %v23
    %211 = vmatprep.subr.mxu0 0.0
    %212 = vmatpush1.msra.mxu0 %v24
    %213 = vmatprep.subr.mxu0 0.0
    %214 = vmatpush1.msra.mxu0 %v25
    %215 = vmatprep.subr.mxu0 0.0
    %216 = vmatpush1.msra.mxu0 %v26
    %217 = vmatprep.subr.mxu0 0.0
    %218 = vmatpush1.msra.mxu0 0.0
    %219 = vmatprep.subr.mxu0 0.0
    %220 = vmatpush1.msra.mxu0 0.0
    %221 = vmatprep.subr.mxu0 0.0
    %222 = vmatpush1.msra.mxu0 0.0
    %223 = vmatprep.subr.mxu0 0.0
    %224 = vmatpush1.msra.mxu0 0.0
    %225 = vmatprep.subr.mxu0 0.0
    %226 = vmatpush1.msra.mxu0 0.0
    %227 = vmatprep.subr.mxu0 0.0
    %228 = vmatpush1.msra.mxu0 0.0
    %229 = vmatprep.subr.mxu0 0.0
    %230 = vmatpush1.msra.mxu0 0.0
    %231 = vmatprep.subr.mxu0 0.0
    %232 = vmatpush1.msra.mxu0 0.0
    %233 = vmatprep.subr.mxu0 0.0
    %234 = vmatpush1.msra.mxu0 0.0
    %235 = vmatprep.subr.mxu0 0.0
    %236 = vmatpush1.msra.mxu0 0.0
    %237 = vmatprep.subr.mxu0 0.0
    %238 = vmatpush1.msra.mxu0 0.0
    %239 = vmatprep.subr.mxu0 0.0
    %240 = vmatpush1.msra.mxu0 0.0
    %241 = vmatprep.subr.mxu0 0.0
    %242 = vmatpush1.msra.mxu0 0.0
    %243 = vmatprep.subr.mxu0 0.0
    %244 = vmatpush1.msra.mxu0 0.0
    %245 = vmatprep.subr.mxu0 0.0
    %246 = vmatpush1.msra.mxu0 0.0
    %247 = vmatprep.subr.mxu0 0.0
    %248 = vmatpush1.msra.mxu0 0.0
    %249 = vmatprep.subr.mxu0 0.0
    %250 = vmatpush1.msra.mxu0 0.0
    %251 = vmatprep.subr.mxu0 0.0
    %252 = vmatpush1.msra.mxu0 0.0
    %253 = vmatprep.subr.mxu0 0.0
    %254 = vmatpush1.msra.mxu0 0.0
    %255 = vmatprep.subr.mxu0 0.0
    %256 = vmatpush1.msra.mxu0 0.0
    %257 = vmatprep.subr.mxu0 0.0
    %258 = vmatpush1.msra.mxu0 0.0
    %259 = vmatprep.subr.mxu0 0.0
    %260 = vmatpush1.msra.mxu0 0.0
    %261 = vmatprep.subr.mxu0 0.0
    %262 = vmatpush1.msra.mxu0 0.0
    %263 = vmatprep.subr.mxu0 0.0
    %264 = vmatpush1.msra.mxu0 0.0
    %265 = vmatprep.mubr.f32.mxu0 0.0
    %266 = vmatmul.mubr.f32.gmra.mrb[0].mxu0 %v199
    %v267 = vpop.f32.mrb[0].mxu0
    %v268 = vadd.f32 0.0, %v267
    %v269 = vpop.f32.mrb[0].mxu0
    %270 = vdwg.mxu0
    %v271 = vrcp.pop %v194
    %v272 = vmul.f32 1.0, %v271
    %v273 = vmul.f32 %v268, %v272
    %v274 = vlaneseq
    %v275 = vshrl.u32 %v274, 7
    %v276 = vsub.s32 1, %v275
    %v277 = vrot.slane %v35, %v276
    %v278 = vadd.f32 %v273, %v277
    %v280 = vrot.slane %v278, 6
    %v282 = vsel %vm49, %v132, %v280
    %v283 = vlaneseq
    %v284 = vshrl.u32 %v283, 7
    %vm285 = vcmp.lt.s32.totalorder %v284, 2
    %vm286 = vcmask 261120
    %v288 = vsel %vm286, %v282, 0
    %290 = vmatprep.subr.mxu0 0.0
    %291 = vmatpush1.msra.mxu0 %v27
    %292 = vmatprep.subr.mxu0 0.0
    %293 = vmatpush1.msra.mxu0 %v28
    %294 = vmatprep.subr.mxu0 0.0
    %295 = vmatpush1.msra.mxu0 %v29
    %296 = vmatprep.subr.mxu0 0.0
    %297 = vmatpush1.msra.mxu0 %v30
    %298 = vmatprep.subr.mxu0 0.0
    %299 = vmatpush1.msra.mxu0 0.0
    %300 = vmatprep.subr.mxu0 0.0
    %301 = vmatpush1.msra.mxu0 0.0
    %302 = vmatprep.subr.mxu0 0.0
    %303 = vmatpush1.msra.mxu0 0.0
    %304 = vmatprep.subr.mxu0 0.0
    %305 = vmatpush1.msra.mxu0 0.0
    %306 = vmatprep.subr.mxu0 0.0
    %307 = vmatpush1.msra.mxu0 0.0
    %308 = vmatprep.subr.mxu0 0.0
    %309 = vmatpush1.msra.mxu0 0.0
    %310 = vmatprep.subr.mxu0 0.0
    %311 = vmatpush1.msra.mxu0 0.0
    %312 = vmatprep.subr.mxu0 0.0
    %313 = vmatpush1.msra.mxu0 0.0
    %314 = vmatprep.subr.mxu0 0.0
    %315 = vmatpush1.msra.mxu0 0.0
    %316 = vmatprep.subr.mxu0 0.0
    %317 = vmatpush1.msra.mxu0 0.0
    %318 = vmatprep.subr.mxu0 0.0
    %319 = vmatpush1.msra.mxu0 0.0
    %320 = vmatprep.subr.mxu0 0.0
    %321 = vmatpush1.msra.mxu0 0.0
    %322 = vmatprep.subr.mxu0 0.0
    %323 = vmatpush1.msra.mxu0 0.0
    %324 = vmatprep.subr.mxu0 0.0
    %325 = vmatpush1.msra.mxu0 0.0
    %326 = vmatprep.subr.mxu0 0.0
    %327 = vmatpush1.msra.mxu0 0.0
    %328 = vmatprep.subr.mxu0 0.0
    %329 = vmatpush1.msra.mxu0 0.0
    %330 = vmatprep.subr.mxu0 0.0
    %331 = vmatpush1.msra.mxu0 0.0
    %332 = vmatprep.subr.mxu0 0.0
    %333 = vmatpush1.msra.mxu0 0.0
    %334 = vmatprep.subr.mxu0 0.0
    %335 = vmatpush1.msra.mxu0 0.0
    %336 = vmatprep.subr.mxu0 0.0
    %337 = vmatpush1.msra.mxu0 0.0
    %338 = vmatprep.subr.mxu0 0.0
    %339 = vmatpush1.msra.mxu0 0.0
    %340 = vmatprep.subr.mxu0 0.0
    %341 = vmatpush1.msra.mxu0 0.0
    %342 = vmatprep.subr.mxu0 0.0
    %343 = vmatpush1.msra.mxu0 0.0
    %344 = vmatprep.subr.mxu0 0.0
    %345 = vmatpush1.msra.mxu0 0.0
    %346 = vmatprep.subr.mxu0 0.0
    %347 = vmatpush1.msra.mxu0 0.0
    %348 = vmatprep.subr.mxu0 0.0
    %349 = vmatpush1.msra.mxu0 0.0
    %350 = vmatprep.subr.mxu0 0.0
    %351 = vmatpush1.msra.mxu0 0.0
    %352 = vmatprep.subr.mxu0 0.0
    %353 = vmatpush1.msra.mxu0 0.0
    %354 = vmatprep.mubr.f32.mxu0 0.0
    %355 = vmatmul.mubr.f32.gmra.mrb[0].mxu0 %v288
    %v356 = vpop.f32.mrb[0].mxu0
    %v357 = vadd.f32 0.0, %v356
    %v358 = vpop.f32.mrb[0].mxu0
    %359 = vdwg.mxu0
    %v360 = vsel %vm285, 1, 0
    %vm361 = vcmp.eq.s32.totalorder %v360, 1
    %363 = vrot.lane.b32.xlu0 %v357, 112
    %v364 = vpop.permute.xlu0 %363
    %v366 = vsel %vm361, %v357, %v364
    %v368 = vrot.slane %v35, 2
    %v370 = vadd.f32 %v366, %v368
    %v371 = vmul.f32 %v370, 0.5
    %v372 = vmul.f32 %v370, 0.70710677
    %v373 = verf.f32.pop %v372
    %v374 = vadd.f32 %v373, 1.0
    %v375 = vmul.f32 %v371, %v374
    %vm376 = vcmask 130048
    %v378 = vsel %vm376, %v375, 0
    %380 = vmatprep.subr.mxu0 0.0
    %381 = vmatpush1.msra.mxu0 %v31
    %382 = vmatprep.subr.mxu0 0.0
    %383 = vmatpush1.msra.mxu0 %v32
    %384 = vmatprep.subr.mxu0 0.0
    %385 = vmatpush1.msra.mxu0 0.0
    %386 = vmatprep.subr.mxu0 0.0
    %387 = vmatpush1.msra.mxu0 0.0
    %388 = vmatprep.subr.mxu0 0.0
    %389 = vmatpush1.msra.mxu0 0.0
    %390 = vmatprep.subr.mxu0 0.0
    %391 = vmatpush1.msra.mxu0 0.0
    %392 = vmatprep.subr.mxu0 0.0
    %393 = vmatpush1.msra.mxu0 0.0
    %394 = vmatprep.subr.mxu0 0.0
    %395 = vmatpush1.msra.mxu0 0.0
    %396 = vmatprep.subr.mxu0 0.0
    %397 = vmatpush1.msra.mxu0 0.0
    %398 = vmatprep.subr.mxu0 0.0
    %399 = vmatpush1.msra.mxu0 0.0
    %400 = vmatprep.subr.mxu0 0.0
    %401 = vmatpush1.msra.mxu0 0.0
    %402 = vmatprep.subr.mxu0 0.0
    %403 = vmatpush1.msra.mxu0 0.0
    %404 = vmatprep.subr.mxu0 0.0
    %405 = vmatpush1.msra.mxu0 0.0
    %406 = vmatprep.subr.mxu0 0.0
    %407 = vmatpush1.msra.mxu0 0.0
    %408 = vmatprep.subr.mxu0 0.0
    %409 = vmatpush1.msra.mxu0 0.0
    %410 = vmatprep.subr.mxu0 0.0
    %411 = vmatpush1.msra.mxu0 0.0
    %412 = vmatprep.subr.mxu0 0.0
    %413 = vmatpush1.msra.mxu0 0.0
    %414 = vmatprep.subr.mxu0 0.0
    %415 = vmatpush1.msra.mxu0 0.0
    %416 = vmatprep.subr.mxu0 0.0
    %417 = vmatpush1.msra.mxu0 0.0
    %418 = vmatprep.subr.mxu0 0.0
    %419 = vmatpush1.msra.mxu0 0.0
    %420 = vmatprep.subr.mxu0 0.0
    %421 = vmatpush1.msra.mxu0 0.0
    %422 = vmatprep.subr.mxu0 0.0
    %423 = vmatpush1.msra.mxu0 0.0
    %424 = vmatprep.subr.mxu0 0.0
    %425 = vmatpush1.msra.mxu0 0.0
    %426 = vmatprep.subr.mxu0 0.0
    %427 = vmatpush1.msra.mxu0 0.0
    %428 = vmatprep.subr.mxu0 0.0
    %429 = vmatpush1.msra.mxu0 0.0
    %430 = vmatprep.subr.mxu0 0.0
    %431 = vmatpush1.msra.mxu0 0.0
    %432 = vmatprep.subr.mxu0 0.0
    %433 = vmatpush1.msra.mxu0 0.0
    %434 = vmatprep.subr.mxu0 0.0
    %435 = vmatpush1.msra.mxu0 0.0
    %436 = vmatprep.subr.mxu0 0.0
    %437 = vmatpush1.msra.mxu0 0.0
    %438 = vmatprep.subr.mxu0 0.0
    %439 = vmatpush1.msra.mxu0 0.0
    %440 = vmatprep.subr.mxu0 0.0
    %441 = vmatpush1.msra.mxu0 0.0
    %442 = vmatprep.subr.mxu0 0.0
    %443 = vmatpush1.msra.mxu0 0.0
    %444 = vmatprep.mubr.f32.mxu0 0.0
    %445 = vmatmul.mubr.f32.gmra.mrb[0].mxu0 %v378
    %v446 = vpop.f32.mrb[0].mxu0
    %v447 = vadd.f32 0.0, %v446
    %v448 = vpop.f32.mrb[0].mxu0
    %449 = vdwg.mxu0
    %451 = vrot.lane.b32.xlu0 %v447, 112
    %v452 = vpop.permute.xlu0 %451
    %v454 = vsel %vm361, %v447, %v452
    %455 = vrot.lane.b32.xlu0 %v368, 112
    %v456 = vpop.permute.xlu0 %455
    %v458 = vadd.f32 %v454, %v456
    %v459 = vadd.f32 %v458, %v370
    %vm460 = vcmask 125952
    %v461 = vsel %vm460, %v459, 0.0
    %462 = vadd.xlane.f32.xlu0 %v461
    %v463 = vpop.xlane.xlu0 %462
    %v464 = vrcp.pop 16.0
    %v465 = vmul.f32 %v463, %v464
    %v466 = vsub.f32 %v459, %v465
    %v467 = vmul.f32 %v466, %v466
    %v468 = vsel %vm460, %v467, 0.0
    %469 = vadd.xlane.f32.xlu0 %v468
    %v470 = vpop.xlane.xlu0 %469
    %v471 = vmul.f32 %v470, %v464
    %v472 = vadd.f32 %v471, 1e-05
    %v473 = vrsqrt.pop %v472
    %v474 = vmul.f32 %v466, %v473
    %475 = vrot.lane.b32.xlu0 %v368, 96
    %v476 = vpop.permute.xlu0 %475
    %v478 = vmul.f32 %v474, %v476
    %479 = vrot.lane.b32.xlu0 %v368, 80
    %v480 = vpop.permute.xlu0 %479
    %v482 = vadd.f32 %v478, %v480
    %v484 = vsel %vm376, %v482, 0
    %486 = vmatprep.subr.mxu0 0.0
    %487 = vmatpush1.xpose.msra.mxu0 %v484
    %488 = vmatprep.subr.mxu0 0.0
    %489 = vmatpush1.xpose.msra.mxu0 0.0
    %490 = vmatprep.subr.mxu0 0.0
    %491 = vmatpush1.xpose.msra.mxu0 0.0
    %492 = vmatprep.subr.mxu0 0.0
    %493 = vmatpush1.xpose.msra.mxu0 0.0
    %494 = vmatprep.subr.mxu0 0.0
    %495 = vmatpush1.xpose.msra.mxu0 0.0
    %496 = vmatprep.subr.mxu0 0.0
    %497 = vmatpush1.xpose.msra.mxu0 0.0
    %498 = vmatprep.subr.mxu0 0.0
    %499 = vmatpush1.xpose.msra.mxu0 0.0
    %500 = vmatprep.subr.mxu0 0.0
    %501 = vmatpush1.xpose.msra.mxu0 0.0
    %502 = vmatprep.subr.mxu0 0.0
    %503 = vmatpush1.xpose.msra.mxu0 0.0
    %504 = vmatprep.subr.mxu0 0.0
    %505 = vmatpush1.xpose.msra.mxu0 0.0
    %506 = vmatprep.subr.mxu0 0.0
    %507 = vmatpush1.xpose.msra.mxu0 0.0
    %508 = vmatprep.subr.mxu0 0.0
    %509 = vmatpush1.xpose.msra.mxu0 0.0
    %510 = vmatprep.subr.mxu0 0.0
    %511 = vmatpush1.xpose.msra.mxu0 0.0
    %512 = vmatprep.subr.mxu0 0.0
    %513 = vmatpush1.xpose.msra.mxu0 0.0
    %514 = vmatprep.subr.mxu0 0.0
    %515 = vmatpush1.xpose.msra.mxu0 0.0
    %516 = vmatprep.subr.mxu0 0.0
    %517 = vmatpush1.xpose.msra.mxu0 0.0
    %518 = vmatprep.subr.mxu0 0.0
    %519 = vmatpush1.xpose.msra.mxu0 0.0
    %520 = vmatprep.subr.mxu0 0.0
    %521 = vmatpush1.xpose.msra.mxu0 0.0
    %522 = vmatprep.subr.mxu0 0.0
    %523 = vmatpush1.xpose.msra.mxu0 0.0
    %524 = vmatprep.subr.mxu0 0.0
    %525 = vmatpush1.xpose.msra.mxu0 0.0
    %526 = vmatprep.subr.mxu0 0.0
    %527 = vmatpush1.xpose.msra.mxu0 0.0
    %528 = vmatprep.subr.mxu0 0.0
    %529 = vmatpush1.xpose.msra.mxu0 0.0
    %530 = vmatprep.subr.mxu0 0.0
    %531 = vmatpush1.xpose.msra.mxu0 0.0
    %532 = vmatprep.subr.mxu0 0.0
    %533 = vmatpush1.xpose.msra.mxu0 0.0
    %534 = vmatprep.subr.mxu0 0.0
    %535 = vmatpush1.xpose.msra.mxu0 0.0
    %536 = vmatprep.subr.mxu0 0.0
    %537 = vmatpush1.xpose.msra.mxu0 0.0
    %538 = vmatprep.subr.mxu0 0.0
    %539 = vmatpush1.xpose.msra.mxu0 0.0
    %540 = vmatprep.subr.mxu0 0.0
    %541 = vmatpush1.xpose.msra.mxu0 0.0
    %542 = vmatprep.subr.mxu0 0.0
    %543 = vmatpush1.xpose.msra.mxu0 0.0
    %544 = vmatprep.subr.mxu0 0.0
    %545 = vmatpush1.xpose.msra.mxu0 0.0
    %546 = vmatprep.subr.mxu0 0.0
    %547 = vmatpush1.xpose.msra.mxu0 0.0
    %548 = vmatprep.subr.mxu0 0.0
    %549 = vmatpush1.xpose.msra.mxu0 0.0
    %550 = vmatprep.mubr.f32.mxu0 0.0
    %551 = vmatmul.mubr.f32.gmra.mrb[0].mxu0 %v484
    %v552 = vpop.f32.mrb[0].mxu0
    %v553 = vadd.f32 0.0, %v552
    %v554 = vpop.f32.mrb[0].mxu0
    %555 = vdwg.mxu0
    %v557 = vsel %vm376, %v33, 0
    %v560 = vsel %vm376, %v34, 0
    %562 = vmatprep.subr.mxu0 0.0
    %563 = vmatpush1.xpose.msra.mxu0 %v557
    %564 = vmatprep.subr.mxu0 0.0
    %565 = vmatpush1.xpose.msra.mxu0 %v560
    %566 = vmatprep.subr.mxu0 0.0
    %567 = vmatpush1.xpose.msra.mxu0 0.0
    %568 = vmatprep.subr.mxu0 0.0
    %569 = vmatpush1.xpose.msra.mxu0 0.0
    %570 = vmatprep.subr.mxu0 0.0
    %571 = vmatpush1.xpose.msra.mxu0 0.0
    %572 = vmatprep.subr.mxu0 0.0
    %573 = vmatpush1.xpose.msra.mxu0 0.0
    %574 = vmatprep.subr.mxu0 0.0
    %575 = vmatpush1.xpose.msra.mxu0 0.0
    %576 = vmatprep.subr.mxu0 0.0
    %577 = vmatpush1.xpose.msra.mxu0 0.0
    %578 = vmatprep.subr.mxu0 0.0
    %579 = vmatpush1.xpose.msra.mxu0 0.0
    %580 = vmatprep.subr.mxu0 0.0
    %581 = vmatpush1.xpose.msra.mxu0 0.0
    %582 = vmatprep.subr.mxu0 0.0
    %583 = vmatpush1.xpose.msra.mxu0 0.0
    %584 = vmatprep.subr.mxu0 0.0
    %585 = vmatpush1.xpose.msra.mxu0 0.0
    %586 = vmatprep.subr.mxu0 0.0
    %587 = vmatpush1.xpose.msra.mxu0 0.0
    %588 = vmatprep.subr.mxu0 0.0
    %589 = vmatpush1.xpose.msra.mxu0 0.0
    %590 = vmatprep.subr.mxu0 0.0
    %591 = vmatpush1.xpose.msra.mxu0 0.0
    %592 = vmatprep.subr.mxu0 0.0
    %593 = vmatpush1.xpose.msra.mxu0 0.0
    %594 = vmatprep.subr.mxu0 0.0
    %595 = vmatpush1.xpose.msra.mxu0 0.0
    %596 = vmatprep.subr.mxu0 0.0
    %597 = vmatpush1.xpose.msra.mxu0 0.0
    %598 = vmatprep.subr.mxu0 0.0
    %599 = vmatpush1.xpose.msra.mxu0 0.0
    %600 = vmatprep.subr.mxu0 0.0
    %601 = vmatpush1.xpose.msra.mxu0 0.0
    %602 = vmatprep.subr.mxu0 0.0
    %603 = vmatpush1.xpose.msra.mxu0 0.0
    %604 = vmatprep.subr.mxu0 0.0
    %605 = vmatpush1.xpose.msra.mxu0 0.0
    %606 = vmatprep.subr.mxu0 0.0
    %607 = vmatpush1.xpose.msra.mxu0 0.0
    %608 = vmatprep.subr.mxu0 0.0
    %609 = vmatpush1.xpose.msra.mxu0 0.0
    %610 = vmatprep.subr.mxu0 0.0
    %611 = vmatpush1.xpose.msra.mxu0 0.0
    %612 = vmatprep.subr.mxu0 0.0
    %613 = vmatpush1.xpose.msra.mxu0 0.0
    %614 = vmatprep.subr.mxu0 0.0
    %615 = vmatpush1.xpose.msra.mxu0 0.0
    %616 = vmatprep.subr.mxu0 0.0
    %617 = vmatpush1.xpose.msra.mxu0 0.0
    %618 = vmatprep.subr.mxu0 0.0
    %619 = vmatpush1.xpose.msra.mxu0 0.0
    %620 = vmatprep.subr.mxu0 0.0
    %621 = vmatpush1.xpose.msra.mxu0 0.0
    %622 = vmatprep.subr.mxu0 0.0
    %623 = vmatpush1.xpose.msra.mxu0 0.0
    %624 = vmatprep.subr.mxu0 0.0
    %625 = vmatpush1.xpose.msra.mxu0 0.0
    %626 = vmatprep.mubr.f32.mxu0 0.0
    %627 = vmatmul.mubr.f32.gmra.mrb[0].mxu0 %v484
    %v628 = vpop.f32.mrb[0].mxu0
    %v629 = vadd.f32 0.0, %v628
    %v630 = vpop.f32.mrb[0].mxu0
    %631 = vdwg.mxu0
    %v632 = vmul.f32 %v482, %v482
    %v633 = vsel %vm460, %v632, 0.0
    %634 = vadd.xlane.f32.xlu0 %v633
    %v635 = vpop.xlane.xlu0 %634
    %v636 = vmul.f32 %v33, %v33
    %v637 = vmul.f32 %v34, %v34
    %v638 = vsel %vm376, %v636, 0.0
    %639 = vadd.xlane.f32.xlu0 %v638
    %v640 = vpop.xlane.xlu0 %639
    %v641 = vsel %vm376, %v637, 0.0
    %642 = vadd.xlane.f32.xlu0 %v641
    %v643 = vpop.xlane.xlu0 %642
    %v645 = vlaneseq
    %v646 = vshrl.u32 %v645, 7
    %v647 = vsub.s32 %v136, %v646
    %v648 = vrot.slane %v640, %v647
    %vm649 = vcmask 1042434
    %v650 = vsel %vm649, %v648, %v648
    %vm651 = vcmask 1043459
    %v652 = vsel %vm651, %v648, %v650
    %v655 = vlaneseq
    %v656 = vshrl.u32 %v655, 7
    %v657 = vsub.s32 %v136, %v656
    %v658 = vrot.slane %v643, %v657
    %v659 = vsel %vm649, %v658, %v658
    %v660 = vsel %vm651, %v658, %v659
    %v662 = vsel %vm361, %v652, %v660
    %v663 = vadd.f32 %v635, %v662
    %665 = vrot.lane.b32.xlu0 %v629, 120
    %v666 = vpop.permute.xlu0 %665
    %v668 = vsel %vm361, %v629, %v666
    %v669 = vmul.f32 %v668, 2.0
    %v670 = vsub.f32 %v663, %v669
    %vm671 = vcmask 60416
    %v672 = vsel %vm671, %v670, inf
    %673 = vmin.xlane.f32.xlu0 %v672
    %v674 = vpop.xlane.xlu0 %673
    %v675 = vsub.f32 %v670, %v674
    %v676 = vmul.f32 %v675, -0.5
    %v677 = vmul.f32 %v676, 1.442695
    %v678 = vpow.pop %v677
    %v679 = vsel %vm671, %v678, 0.0
    %680 = vadd.xlane.f32.xlu0 %v679
    %v681 = vpop.xlane.xlu0 %680
    %v682 = vrcp.pop %v681
    %v683 = vmul.f32 %v678, %v682
    %v685 = vrot.slane %v683, 2
    %vm686 = vcmask 64512
    %v687 = vsel %vm686, %v683, 0
    %v689 = vsel %vm686, %v685, 0
    %691 = vmatprep.subr.mxu0 0.0
    %692 = vmatpush1.xpose.msra.mxu0 %v689
    %693 = vmatprep.subr.mxu0 0.0
    %694 = vmatpush1.xpose.msra.mxu0 0.0
    %695 = vmatprep.subr.mxu0 0.0
    %696 = vmatpush1.xpose.msra.mxu0 0.0
    %697 = vmatprep.subr.mxu0 0.0
    %698 = vmatpush1.xpose.msra.mxu0 0.0
    %699 = vmatprep.subr.mxu0 0.0
    %700 = vmatpush1.xpose.msra.mxu0 0.0
    %701 = vmatprep.subr.mxu0 0.0
    %702 = vmatpush1.xpose.msra.mxu0 0.0
    %703 = vmatprep.subr.mxu0 0.0
    %704 = vmatpush1.xpose.msra.mxu0 0.0
    %705 = vmatprep.subr.mxu0 0.0
    %706 = vmatpush1.xpose.msra.mxu0 0.0
    %707 = vmatprep.subr.mxu0 0.0
    %708 = vmatpush1.xpose.msra.mxu0 0.0
    %709 = vmatprep.subr.mxu0 0.0
    %710 = vmatpush1.xpose.msra.mxu0 0.0
    %711 = vmatprep.subr.mxu0 0.0
    %712 = vmatpush1.xpose.msra.mxu0 0.0
    %713 = vmatprep.subr.mxu0 0.0
    %714 = vmatpush1.xpose.msra.mxu0 0.0
    %715 = vmatprep.subr.mxu0 0.0
    %716 = vmatpush1.xpose.msra.mxu0 0.0
    %717 = vmatprep.subr.mxu0 0.0
    %718 = vmatpush1.xpose.msra.mxu0 0.0
    %719 = vmatprep.subr.mxu0 0.0
    %720 = vmatpush1.xpose.msra.mxu0 0.0
    %721 = vmatprep.subr.mxu0 0.0
    %722 = vmatpush1.xpose.msra.mxu0 0.0
    %723 = vmatprep.subr.mxu0 0.0
    %724 = vmatpush1.xpose.msra.mxu0 0.0
    %725 = vmatprep.subr.mxu0 0.0
    %726 = vmatpush1.xpose.msra.mxu0 0.0
    %727 = vmatprep.subr.mxu0 0.0
    %728 = vmatpush1.xpose.msra.mxu0 0.0
    %729 = vmatprep.subr.mxu0 0.0
    %730 = vmatpush1.xpose.msra.mxu0 0.0
    %731 = vmatprep.subr.mxu0 0.0
    %732 = vmatpush1.xpose.msra.mxu0 0.0
    %733 = vmatprep.subr.mxu0 0.0
    %734 = vmatpush1.xpose.msra.mxu0 0.0
    %735 = vmatprep.subr.mxu0 0.0
    %736 = vmatpush1.xpose.msra.mxu0 0.0
    %737 = vmatprep.subr.mxu0 0.0
    %738 = vmatpush1.xpose.msra.mxu0 0.0
    %739 = vmatprep.subr.mxu0 0.0
    %740 = vmatpush1.xpose.msra.mxu0 0.0
    %741 = vmatprep.subr.mxu0 0.0
    %742 = vmatpush1.xpose.msra.mxu0 0.0
    %743 = vmatprep.subr.mxu0 0.0
    %744 = vmatpush1.xpose.msra.mxu0 0.0
    %745 = vmatprep.subr.mxu0 0.0
    %746 = vmatpush1.xpose.msra.mxu0 0.0
    %747 = vmatprep.subr.mxu0 0.0
    %748 = vmatpush1.xpose.msra.mxu0 0.0
    %749 = vmatprep.subr.mxu0 0.0
    %750 = vmatpush1.xpose.msra.mxu0 0.0
    %751 = vmatprep.subr.mxu0 0.0
    %752 = vmatpush1.xpose.msra.mxu0 0.0
    %753 = vmatprep.subr.mxu0 0.0
    %754 = vmatpush1.xpose.msra.mxu0 0.0
    %755 = vmatprep.mubr.f32.mxu0 0.0
    %756 = vmatmul.mubr.f32.gmra.mrb[0].mxu0 %v687
    %v757 = vpop.f32.mrb[0].mxu0
    %v758 = vadd.f32 0.0, %v757
    %v759 = vpop.f32.mrb[0].mxu0
    %760 = vdwg.mxu0
    %vm761 = vcmask 9216
    %v762 = vsel %vm761, %v758, 0.0
    %763 = vadd.xlane.f32.xlu0 %v762
    %v764 = vpop.xlane.xlu0 %763
    %v765 = vrcp.pop %v764
    %v766 = vmul.f32 %v758, %v765
    %v768 = vrot.slane %v553, 2
    %769 = vrot.lane.b32.xlu0 %v768, 126
    %v770 = vpop.permute.xlu0 %769
    %v772 = vadd.f32 %v553, %v770
    %v773 = vmul.f32 %v772, 0.5
    %v774 = vsel %vm761, %v773, -inf
    %775 = vmax.xlane.f32.xlu0 %v774
    %v776 = vpop.xlane.xlu0 %775
    %v777 = vsub.f32 %v773, %v776
    %v778 = vmul.f32 %v777, 1.442695
    %v779 = vpow.pop %v778
    %v780 = vsel %vm761, %v779, 0.0
    %781 = vadd.xlane.f32.xlu0 %v780
    %v782 = vpop.xlane.xlu0 %781
    %v783 = vrcp.pop %v782
    %v784 = vmul.f32 %v779, %v783
    %v785 = vmul.f32 %v784, 0.5
    %v786 = vmul.f32 %v766, 0.5
    %v787 = vadd.f32 %v785, %v786
    %v788 = vsub.f32 0.0, %v787
    %vm789 = vcmask 11266
    %v790 = vsel %vm789, %v553, -inf
    %791 = vmax.xlane.f32.xlu0 %v790
    %v792 = vpop.xlane.xlu0 %791
    %v793 = vsub.f32 %v553, %v792
    %v794 = vmul.f32 %v793, 1.442695
    %v795 = vpow.pop %v794
    %v796 = vsel %vm789, %v795, 0.0
    %797 = vadd.xlane.f32.xlu0 %v796
    %v798 = vpop.xlane.xlu0 %797
    %v799 = vlog2.pop %v798
    %v800 = vmul.f32 %v799, 0.6931472
    %v801 = vsub.f32 %v793, %v800
    %v803 = vrot.slane %v801, 2
    %v805 = vmul.f32 %v788, %v803
    %v806 = vsel %vm761, %v805, 0.0
    %807 = vadd.xlane.f32.xlu0 %v806
    %v808 = vpop.xlane.xlu0 %807
    %v809 = vrot.slane %v790, 4
    %v810 = vmax.f32 %v790, %v809
    %v811 = vrot.slane %v810, 2
    %v812 = vmax.f32 %v810, %v811
    %v813 = vrot.slane %v812, 1
    %v814 = vmax.f32 %v812, %v813
    %v815 = vsub.f32 %v553, %v814
    %v816 = vmul.f32 %v815, 1.442695
    %v817 = vpow.pop %v816
    %v819 = vrot.slane %v817, 2
    %v821 = vsel %vm761, %v819, 0.0
    %v822 = vrot.slane %v821, 4
    %v823 = vadd.f32 %v821, %v822
    %v824 = vrot.slane %v823, 2
    %v825 = vadd.f32 %v823, %v824
    %v826 = vrot.slane %v825, 1
    %v827 = vadd.f32 %v825, %v826
    %v828 = vlog2.pop %v827
    %v829 = vmul.f32 %v828, 0.6931472
    %v830 = vsub.f32 %v815, %v829
    %v832 = vrot.slane %v830, 2
    %v834 = vmul.f32 %v788, %v832
    %v835 = vsel %vm761, %v834, 0.0
    %v836 = vrot.slane %v835, 4
    %v837 = vadd.f32 %v835, %v836
    %v838 = vrot.slane %v837, 2
    %v839 = vadd.f32 %v837, %v838
    %v840 = vrot.slane %v839, 1
    %v841 = vadd.f32 %v839, %v840
    %vm842 = vcmask 8192
    %v843 = vsel %vm842, %v841, 0.0
    %844 = vadd.xlane.f32.xlu0 %v843
    %v845 = vpop.xlane.xlu0 %844
    %v846 = vrot.slane %v845, 4
    %v847 = vadd.f32 %v845, %v846
    %v848 = vrot.slane %v847, 2
    %v849 = vadd.f32 %v847, %v848
    %v850 = vrot.slane %v849, 1
    %v851 = vadd.f32 %v849, %v850
    %s852 = vtos %v851
    %v853 = vrcp.pop 2.0
    %s854 = vtos %v853
    %s855 = smul.f32 %s852, %s854
    %vm856 = vcmask 1024
    %v857 = vsel %vm856, %v808, 0.0
    %858 = vadd.xlane.f32.xlu0 %v857
    %v859 = vpop.xlane.xlu0 %858
    %v860 = vrot.slane %v859, 4
    %v861 = vadd.f32 %v859, %v860
    %v862 = vrot.slane %v861, 2
    %v863 = vadd.f32 %v861, %v862
    %v864 = vrot.slane %v863, 1
    %v865 = vadd.f32 %v863, %v864
    %s866 = vtos %v865
    %v867 = vrcp.pop 2.0
    %s868 = vtos %v867
    %s869 = smul.f32 %s866, %s868
    %s870 = sadd.f32 %s855, %s869
    %s871 = smul.f32 %s870, 0.5
    %v873 = vsub.f32 %v683, %v685
    %v874 = vmul.f32 %v873, %v873
    %v875 = vsel %vm190, %v874, 0.0
    %876 = vadd.xlane.f32.xlu0 %v875
    %v877 = vpop.xlane.xlu0 %876
    %v878 = vrot.slane %v877, 4
    %v879 = vadd.f32 %v877, %v878
    %v880 = vrot.slane %v879, 2
    %v881 = vadd.f32 %v879, %v880
    %v882 = vrot.slane %v881, 1
    %v883 = vadd.f32 %v881, %v882
    %s884 = vtos %v883
    %v885 = vrcp.pop 16.0
    %s886 = vtos %v885
    %s887 = smul.f32 %s884, %s886
    %s888 = sadd.f32 %s871, %s887
    %v889 = vstv %s888
    %vm890 = vcmask 0
    %891 = vst.msk [vmem:[#allocation2] sm:$0x1] %vm890, %v889
    // Predicated region
    $region18: #{cloc_forward.1} parent=1 // pred_check
      _
    $region19: #{cloc_forward.1} parent=1 // pred_check_branch
      %893 = sbr.rel (0) target = $region21
    $region20: #{cloc_forward.1} parent=1 // pred_region
      %s895 = ssub.s32 16, 16
      %896 = vsyncadd [#allocation3], %s895
      %s898 = sshll.u32 [#allocation2], 4
      %s899 = int_to_ptr.vmem [resolvable:$true] %s898
      %901 = dma.vmem_to_hbm [thread:$0]  %s899, 16, %s4, [#allocation3]
    $region21: #{cloc_forward.1} parent=1 // pred_fallthru
      _
    // Predicated region
    $region22: #{cloc_forward.1} parent=1 // pred_check
      _
    $region23: #{cloc_forward.1} parent=1 // pred_check_branch
      %903 = sbr.rel (0) target = $region25
    $region24: #{cloc_forward.1} parent=1 // pred_region
      %904 = dma.done [#allocation3], 16
    $region25: #{cloc_forward.1} parent=1 // pred_fallthru
      _
    %905 = vsyncpa [#allocation3], 1

</llo_original>
